<compile_context>
chip_gen: v7x
topology: tpu7x:2x2x1
jax: 0.10.0
libtpu: 0.0.40
codegen_flags: <defaults>
</compile_context>

<pallas_src>
import jax
import jax.numpy as jnp
from jax import lax
from jax.experimental import pallas as pl
from jax.experimental.pallas import tpu as pltpu

LN_EPS = 1e-5  # torch.nn.LayerNorm default eps


def _vmem_limit_bytes():
    """Per-generation scoped VMEM budget (~75% of physical), safe fallback 48 MiB."""
    try:
        info = pltpu.get_tpu_info()
        phys = getattr(info, "vmem_capacity_bytes", None)
        if phys:
            # v7x: 64 MiB -> 48 MiB ; v5e/v6e: 128 MiB -> 96 MiB
            return int(phys * 0.75)
    except Exception:
        pass
    return 48 * 1024 * 1024


def _row_tile(R, tile_rows):
    # Second-to-last block dim must be a multiple of 8 or the full extent.
    return R if R <= tile_rows else tile_rows


def _col_tile(C, tile_cols):
    # Last block dim must be a multiple of 128 or the full extent.
    if C % 128 == 0 and tile_cols % 128 == 0 and C > tile_cols:
        return tile_cols
    return C


def _fold_ln_into_linear(gamma, beta, w, b, matmul_dtype):
    # LN(x) @ W + b == ((x-mean)*inv) @ (gamma[:,None]*W) + (beta @ W + b)
    w32 = w.astype(jnp.float32)
    w_f = (gamma.astype(jnp.float32)[:, None] * w32).astype(matmul_dtype)
    b_f = (beta.astype(jnp.float32) @ w32 + b.astype(jnp.float32)).reshape(1, -1)
    return w_f, b_f


# ------------- fused LayerNorm + Linear, weight-resident fast path -------------
def _prenorm_linear_resident_kernel(x_ref, w_ref, b_ref, o_ref):
    x = x_ref[...].astype(jnp.float32)                   # (tm, D)
    d_inv = 1.0 / x.shape[-1]
    s1 = jnp.sum(x, axis=-1, keepdims=True)              # one pass for both stats
    s2 = jnp.sum(x * x, axis=-1, keepdims=True)
    mean = s1 * d_inv
    var = jnp.maximum(s2 * d_inv - mean * mean, 0.0)      # biased variance (torch LN)
    xn = ((x - mean) * lax.rsqrt(var + LN_EPS)).astype(w_ref.dtype)
    acc = jnp.dot(xn, w_ref[...], preferred_element_type=jnp.float32)
    o_ref[...] = (acc + b_ref[...].astype(jnp.float32)).astype(o_ref.dtype)


# ---------- fused LayerNorm + Linear, N-tiled fallback with LN cache -----------
def _prenorm_linear_tiled_kernel(x_ref, w_ref, b_ref, o_ref, xn_ref):
    @pl.when(pl.program_id(1) == 0)
    def _():
        x = x_ref[...].astype(jnp.float32)
        d_inv = 1.0 / x.shape[-1]
        s1 = jnp.sum(x, axis=-1, keepdims=True)
        s2 = jnp.sum(x * x, axis=-1, keepdims=True)
        mean = s1 * d_inv
        var = jnp.maximum(s2 * d_inv - mean * mean, 0.0)
        xn_ref[...] = ((x - mean) * lax.rsqrt(var + LN_EPS)).astype(xn_ref.dtype)

    acc = jnp.dot(xn_ref[...], w_ref[...], preferred_element_type=jnp.float32)
    o_ref[...] = (acc + b_ref[...].astype(jnp.float32)).astype(o_ref.dtype)


def prenorm_linear(x, gamma, beta, w, b, *, tile_rows=512, tile_cols=512,
                   matmul_dtype=jnp.bfloat16, out_dtype=None, weight_resident=None):
    """fn(LayerNorm(x)) with fn = Linear(w, b), fused into a single Pallas kernel.

    x: (B, N, D); gamma, beta: (D,); w: (D, D_out); b: (D_out,).
    Pass bf16 x / out_dtype=bf16 to halve HBM traffic if the surrounding net is bf16.
    """
    B, N, D = x.shape
    D_out = w.shape[1]
    R = B * N
    x2d = x.reshape(R, D)
    out_dtype = x.dtype if out_dtype is None else out_dtype

    w_f, b_f = _fold_ln_into_linear(gamma, beta, w, b, matmul_dtype)

    limit = _vmem_limit_bytes()
    x_b = jnp.dtype(x2d.dtype).itemsize
    w_b = jnp.dtype(matmul_dtype).itemsize
    o_b = jnp.dtype(out_dtype).itemsize

    def vmem_need(tm, tn):
        # double-buffered x/out blocks + (conservatively double-buffered) weight
        # + bias + LN-cache scratch headroom.
        return (2 * tm * D * x_b + 2 * D * tn * w_b + 2 * tm * tn * o_b
                + 2 * tn * 4 + tm * D * w_b)

    # Pick the largest row tile (<= tile_rows) for which a fully resident weight fits.
    tm = _row_tile(R, tile_rows)
    if weight_resident is None:
        resident, tm_res = False, tm
        for cand in sorted({tm, 256, 128, 64, 8}, reverse=True):
            cand = _row_tile(R, cand)
            if vmem_need(cand, D_out) <= int(limit * 0.9):
                resident, tm_res = True, cand
                break
        if resident:
            tm = tm_res
    else:
        resident = bool(weight_resident)

    if resident:
        grid = (pl.cdiv(R, tm),)
        out2d = pl.pallas_call(
            _prenorm_linear_resident_kernel,
            out_shape=jax.ShapeDtypeStruct((R, D_out), out_dtype),
            grid_spec=pltpu.PrefetchScalarGridSpec(
                num_scalar_prefetch=0,
                grid=grid,
                in_specs=[
                    pl.BlockSpec((tm, D), lambda i: (i, 0)),        # activations
                    pl.BlockSpec((D, D_out), lambda i: (0, 0)),     # VMEM-resident weight
                    pl.BlockSpec((1, D_out), lambda i: (0, 0)),     # folded bias
                ],
                out_specs=pl.BlockSpec((tm, D_out), lambda i: (i, 0)),
            ),
            compiler_params=pltpu.CompilerParams(
                dimension_semantics=("parallel",),   # row grid shards across v7x's 2 TCs
                vmem_limit_bytes=limit),
        )(x2d, w_f, b_f)
        return out2d.reshape(B, N, D_out)

    # Fallback: weight is N-tiled and streamed; LN result cached across the j axis.
    tn = _col_tile(D_out, tile_cols)
    grid = (pl.cdiv(R, tm), pl.cdiv(D_out, tn))

    try:
        w_spec = pl.BlockSpec((D, tn), lambda i, j: (0, j),
                              pipeline_mode=pl.Buffered(3))   # hide weight-tile DMA
    except TypeError:
        w_spec = pl.BlockSpec((D, tn), lambda i, j: (0, j))

    out2d = pl.pallas_call(
        _prenorm_linear_tiled_kernel,
        out_shape=jax.ShapeDtypeStruct((R, D_out), out_dtype),
        grid_spec=pltpu.PrefetchScalarGridSpec(
            num_scalar_prefetch=0,
            grid=grid,
            in_specs=[
                pl.BlockSpec((tm, D), lambda i, j: (i, 0)),   # activations (row tile)
                w_spec,                                       # streamed weight tile
                pl.BlockSpec((1, tn), lambda i, j: (0, j)),   # folded bias tile
            ],
            out_specs=pl.BlockSpec((tm, tn), lambda i, j: (i, j)),
            scratch_shapes=[pltpu.VMEM((tm, D), matmul_dtype)],   # LN cache across j
        ),
        compiler_params=pltpu.CompilerParams(
            dimension_semantics=("parallel", "arbitrary"),  # j carries scratch state
            vmem_limit_bytes=limit),
    )(x2d, w_f, b_f)
    return out2d.reshape(B, N, D_out)


# ------------------- standalone LayerNorm (arbitrary `fn`) --------------------
def _layernorm_kernel(x_ref, gamma_ref, beta_ref, o_ref):
    x = x_ref[...].astype(jnp.float32)
    d_inv = 1.0 / x.shape[-1]
    s1 = jnp.sum(x, axis=-1, keepdims=True)
    s2 = jnp.sum(x * x, axis=-1, keepdims=True)
    mean = s1 * d_inv
    var = jnp.maximum(s2 * d_inv - mean * mean, 0.0)
    y = (x - mean) * lax.rsqrt(var + LN_EPS)
    y = y * gamma_ref[...].astype(jnp.float32) + beta_ref[...].astype(jnp.float32)
    o_ref[...] = y.astype(o_ref.dtype)


def layernorm_pallas(x2d, gamma, beta, *, tile_rows=1024):
    R, D = x2d.shape
    tm = _row_tile(R, tile_rows)
    return pl.pallas_call(
        _layernorm_kernel,
        out_shape=jax.ShapeDtypeStruct((R, D), x2d.dtype),
        grid_spec=pltpu.PrefetchScalarGridSpec(
            num_scalar_prefetch=0,
            grid=(pl.cdiv(R, tm),),
            in_specs=[
                pl.BlockSpec((tm, D), lambda i: (i, 0)),
                pl.BlockSpec((1, D), lambda i: (0, 0)),
                pl.BlockSpec((1, D), lambda i: (0, 0)),
            ],
            out_specs=pl.BlockSpec((tm, D), lambda i: (i, 0)),
        ),
        compiler_params=pltpu.CompilerParams(
            dimension_semantics=("parallel",),
            vmem_limit_bytes=_vmem_limit_bytes()),
    )(x2d, gamma.reshape(1, D), beta.reshape(1, D))


def prenorm(x, gamma, beta, fn, *, tile_rows=1024):
    """General PreNorm.forward: fn(LayerNorm(x)) for an arbitrary callable fn."""
    # TODO(synk): an arbitrary `fn` cannot be fused into the LN kernel; only the
    # Linear case (prenorm_linear) is a single fused Pallas kernel.
    B, N, D = x.shape
    y2d = layernorm_pallas(x.reshape(B * N, D), gamma, beta, tile_rows=tile_rows)
    return fn(y2d.reshape(B, N, D))


# ------------------------------------ main ------------------------------------
if __name__ == "__main__":
    # Small but lane-dense demo shapes (D, D_OUT multiples of 128).
    B, N, D, D_OUT = 2, 8, 128, 256
    key = jax.random.PRNGKey(0)
    kx, kg, kb, kw, kbias = jax.random.split(key, 5)

    x = jax.random.normal(kx, (B, N, D), dtype=jnp.float32)
    gamma = 1.0 + 0.1 * jax.random.normal(kg, (D,), dtype=jnp.float32)
    beta = 0.1 * jax.random.normal(kb, (D,), dtype=jnp.float32)
    w = jax.random.normal(kw, (D, D_OUT), dtype=jnp.float32) / jnp.sqrt(D)
    b = 0.05 * jax.random.normal(kbias, (D_OUT,), dtype=jnp.float32)

    # Fused PreNorm+Linear, weight-resident fast path (auto-selected).
    out = jax.block_until_ready(prenorm_linear(x, gamma, beta, w, b))

    # Fused PreNorm+Linear, forced N-tiled fallback (exercises LN-cache scratch).
    out_tiled = jax.block_until_ready(
        prenorm_linear(x, gamma, beta, w, b, weight_resident=False, tile_cols=128))

    # General path (arbitrary fn) -- exercises the standalone LN kernel.
    y_ln = jax.block_until_ready(prenorm(x, gamma, beta, fn=lambda y: y))

    # References in plain JAX.
    mean = jnp.mean(x, axis=-1, keepdims=True)
    var = jnp.mean((x - mean) ** 2, axis=-1, keepdims=True)
    y_ref = (x - mean) / jnp.sqrt(var + LN_EPS) * gamma + beta
    out_ref = jnp.einsum("bnd,de->bne", y_ref, w) + b

    assert out.shape == (B, N, D_OUT)
    assert jnp.allclose(y_ln, y_ref, atol=1e-4, rtol=1e-4)
    # bf16 MXU operands -> slightly looser tolerance against the pure-f32 reference.
    assert jnp.allclose(out, out_ref, atol=3e-2, rtol=3e-2)
    assert jnp.allclose(out_tiled, out_ref, atol=3e-2, rtol=3e-2)
    print("KERNEL_OK")
</pallas_src>

<mosaic_0001>
module attributes {stable_mosaic.version = 11 : i64} {
  func.func @_prenorm_linear_resident_kernel(%arg0: i32, %arg1: memref<16x128xf32, #tpu.memory_space<vmem>>, %arg2: memref<128x256xbf16, #tpu.memory_space<vmem>>, %arg3: memref<1x256xf32, #tpu.memory_space<vmem>>, %arg4: memref<16x256xf32, #tpu.memory_space<vmem>>) attributes {dimension_semantics = [#tpu.dimension_semantics<parallel>], iteration_bounds = array<i64: 1>, scalar_prefetch = 0 : i64, scratch_operands = 0 : i64, tpu.core_type = #tpu.core_type<tc>, window_params = [{transform_indices = @transform_0, window_bounds = array<i64: 16, 128>}, {pipeline_mode = #tpu.pipeline_mode<synchronous>, transform_indices = @transform_1, window_bounds = array<i64: 128, 256>}, {pipeline_mode = #tpu.pipeline_mode<synchronous>, transform_indices = @transform_2, window_bounds = array<i64: 1, 256>}, {transform_indices = @transform_3, window_bounds = array<i64: 16, 256>}]} {
    %c0 = arith.constant 0 : index
    %c0_0 = arith.constant 0 : index
    %0 = vector.load %arg1[%c0, %c0_0] : memref<16x128xf32, #tpu.memory_space<vmem>>, vector<16x128xf32>
    %cst = arith.constant dense<0.000000e+00> : vector<16xf32>
    %1 = vector.multi_reduction <add>, %0, %cst [1] : vector<16x128xf32> to vector<16xf32>
    %2 = vector.shape_cast %1 : vector<16xf32> to vector<16x1xf32>
    %3 = arith.mulf %0, %0 : vector<16x128xf32>
    %cst_1 = arith.constant dense<0.000000e+00> : vector<16xf32>
    %4 = vector.multi_reduction <add>, %3, %cst_1 [1] : vector<16x128xf32> to vector<16xf32>
    %5 = vector.shape_cast %4 : vector<16xf32> to vector<16x1xf32>
    %cst_2 = arith.constant 7.812500e-03 : f32
    %6 = vector.broadcast %cst_2 : f32 to vector<16x1xf32>
    %7 = arith.mulf %2, %6 : vector<16x1xf32>
    %cst_3 = arith.constant 7.812500e-03 : f32
    %8 = vector.broadcast %cst_3 : f32 to vector<16x1xf32>
    %9 = arith.mulf %5, %8 : vector<16x1xf32>
    %10 = arith.mulf %7, %7 : vector<16x1xf32>
    %11 = arith.subf %9, %10 : vector<16x1xf32>
    %cst_4 = arith.constant 0.000000e+00 : f32
    %12 = vector.broadcast %cst_4 : f32 to vector<16x1xf32>
    %13 = arith.maximumf %11, %12 : vector<16x1xf32>
    %14 = vector.broadcast %7 : vector<16x1xf32> to vector<16x128xf32>
    %15 = arith.subf %0, %14 : vector<16x128xf32>
    %cst_5 = arith.constant 9.99999974E-6 : f32
    %16 = vector.broadcast %cst_5 : f32 to vector<16x1xf32>
    %17 = arith.addf %13, %16 : vector<16x1xf32>
    %18 = math.rsqrt %17 : vector<16x1xf32>
    %19 = vector.broadcast %18 : vector<16x1xf32> to vector<16x128xf32>
    %20 = arith.mulf %15, %19 : vector<16x128xf32>
    %21 = arith.truncf %20 : vector<16x128xf32> to vector<16x128xbf16>
    %c0_6 = arith.constant 0 : index
    %c0_7 = arith.constant 0 : index
    %22 = vector.load %arg2[%c0_6, %c0_7] : memref<128x256xbf16, #tpu.memory_space<vmem>>, vector<128x256xbf16>
    %cst_8 = arith.constant dense<0.000000e+00> : vector<16x256xf32>
    %23 = tpu.matmul %21, %22, %cst_8 {dimension_numbers = #tpu.dot_dimension_numbers<[1], [0], [0], [1], [0, 0, 1, 1], [], []>} : vector<16x128xbf16>, vector<128x256xbf16>, vector<16x256xf32> -> vector<16x256xf32>
    %c0_9 = arith.constant 0 : index
    %c0_10 = arith.constant 0 : index
    %24 = vector.load %arg3[%c0_9, %c0_10] : memref<1x256xf32, #tpu.memory_space<vmem>>, vector<1x256xf32>
    %25 = vector.broadcast %24 : vector<1x256xf32> to vector<16x256xf32>
    %26 = arith.addf %23, %25 : vector<16x256xf32>
    %c0_11 = arith.constant 0 : index
    %c0_12 = arith.constant 0 : index
    %27 = vector.load %arg4[%c0_11, %c0_12] : memref<16x256xf32, #tpu.memory_space<vmem>>, vector<16x256xf32>
    tpu.vector_store %arg4[%c0_11, %c0_12], %26 {strides = array<i32>} : memref<16x256xf32, #tpu.memory_space<vmem>>, vector<16x256xf32>,
    return
  }
  func.func @transform_0(%arg0: i32) -> (i32, i32) {
    %c0_i32 = arith.constant 0 : i32
    %c0_i32_0 = arith.constant 0 : i32
    return %arg0, %c0_i32 : i32, i32
  }
  func.func @transform_1(%arg0: i32) -> (i32, i32) {
    %c0_i32 = arith.constant 0 : i32
    %c0_i32_0 = arith.constant 0 : i32
    %c0_i32_1 = arith.constant 0 : i32
    return %c0_i32, %c0_i32_0 : i32, i32
  }
  func.func @transform_2(%arg0: i32) -> (i32, i32) {
    %c0_i32 = arith.constant 0 : i32
    %c0_i32_0 = arith.constant 0 : i32
    %c0_i32_1 = arith.constant 0 : i32
    return %c0_i32, %c0_i32_0 : i32, i32
  }
  func.func @transform_3(%arg0: i32) -> (i32, i32) {
    %c0_i32 = arith.constant 0 : i32
    %c0_i32_0 = arith.constant 0 : i32
    return %arg0, %c0_i32 : i32, i32
  }
}

</mosaic_0001>

<llo_original>
// kernel: tpu_custom_call.1
$region0: #{tpu_custom_call.1}
  #allocation0 [shape = 'u32[]', space=smem, size = 0x4, offset = 0x4, fixed_abs, tag = 'smem constant byte address 0x4 - core index']
  #allocation1 [shape = 'u32[144,128]{1,0:T(1,128)}', space=vmem, size = 0x12000, scoped, tag = 'internal scratch']
  %s0 = inlined_call_operand.hbm [shape: f32[16,128], index: 0, kind: input, shape index: {}]
  %s1 = inlined_call_operand.hbm [shape: bf16[128,256], index: 1, kind: input, shape index: {}]
  %s2 = inlined_call_operand.vmem [shape: f32[1,256], index: 2, kind: input, shape index: {}]
  %s3 = inlined_call_operand.hbm [shape: f32[16,256], index: 3, kind: output, shape index: {}]
  %s4 = sld [smem:[#allocation0]]
  $region30: #{tpu_custom_call.1} parent=0
    _
  %s6 = ssub.s32 1, %s4
  %s7 = scalar_select 0, %s6, %s4
  $region1: #{tpu_custom_call.1} parent=0
    #allocation2 [shape = 'u8[8192]{0}', space=vmem, size = 0x2000, scoped, tag = 'input window, operand 0, single buffered']
    #allocation3 [shape = 's32[1]{0}', space=sflag, size = 0x4, scoped, tag = 'scoped memory for tpu_custom_call.1']
    #allocation4 [shape = 's32[1]{0}', space=sflag, size = 0x4, scoped, tag = 'scoped memory for tpu_custom_call.1']
    #allocation5 [shape = 'u8[65536]{0}', space=vmem, size = 0x10000, scoped, tag = 'input window, operand 1, single buffered']
    #allocation6 [shape = 's32[1]{0}', space=sflag, size = 0x4, scoped, tag = 'scoped memory for tpu_custom_call.1']
    #allocation7 [shape = 'u8[16384]{0}', space=vmem, size = 0x4000, scoped, tag = 'output window, operand 0, single buffered']
    %8 = vsyncpa [#allocation3], 0
    %9 = vsyncpa [#allocation6], 0
    %10 = vsyncpa [#allocation4], 0
    // Predicated region
    $region2: #{tpu_custom_call.1} parent=1 // pred_check
      _
    $region3: #{tpu_custom_call.1} parent=1 // pred_check_branch
      %12 = sbr.rel (0) target = $region5
    $region4: #{tpu_custom_call.1} parent=1 // pred_region
      %s14 = ssub.s32 256, 256
      %15 = vsyncadd [#allocation3], %s14
      %s16 = sshll.u32 [#allocation2], 4
      %s17 = int_to_ptr.vmem [resolvable:$true] %s16
      %22 = dma.hbm_to_vmem [thread:$0]  %s0, 256, %s17, [#allocation3], 128, 128, 8
    $region5: #{tpu_custom_call.1} parent=1 // pred_fallthru
      _
    // Predicated region
    $region6: #{tpu_custom_call.1} parent=1 // pred_check
      _
    $region7: #{tpu_custom_call.1} parent=1 // pred_check_branch
      %24 = sbr.rel (0) target = $region9
    $region8: #{tpu_custom_call.1} parent=1 // pred_region
      %s26 = ssub.s32 2048, 2048
      %27 = vsyncadd [#allocation6], %s26
      %s28 = sshll.u32 [#allocation5], 4
      %s29 = int_to_ptr.vmem [resolvable:$true] %s28
      %34 = dma.hbm_to_vmem [thread:$0]  %s1, 2048, %s29, [#allocation6], 128, 128, 8
    $region9: #{tpu_custom_call.1} parent=1 // pred_fallthru
      _
    // Predicated region
    $region10: #{tpu_custom_call.1} parent=1 // pred_check
      _
    $region11: #{tpu_custom_call.1} parent=1 // pred_check_branch
      %36 = sbr.rel (0) target = $region13
    $region12: #{tpu_custom_call.1} parent=1 // pred_region
      _
    $region13: #{tpu_custom_call.1} parent=1 // pred_fallthru
      _
    // Predicated region
    $region14: #{tpu_custom_call.1} parent=1 // pred_check
      _
    $region15: #{tpu_custom_call.1} parent=1 // pred_check_branch
      %38 = sbr.rel (0) target = $region17
    $region16: #{tpu_custom_call.1} parent=1 // pred_region
      %39 = dma.done [#allocation3], 256
    $region17: #{tpu_custom_call.1} parent=1 // pred_fallthru
      _
    // Predicated region
    $region18: #{tpu_custom_call.1} parent=1 // pred_check
      _
    $region19: #{tpu_custom_call.1} parent=1 // pred_check_branch
      %41 = sbr.rel (0) target = $region21
    $region20: #{tpu_custom_call.1} parent=1 // pred_region
      %42 = dma.done [#allocation6], 2048
    $region21: #{tpu_custom_call.1} parent=1 // pred_fallthru
      _
    %v44 = vld [vmem:[#allocation2] sm:$0xff]
    %v45 = vld [vmem:[#allocation2 + $0x8] sm:$0xff]
    %46 = vadd.xlane.f32.xlu0 %v44
    %v47 = vpop.xlane.xlu0 %46
    %48 = vadd.xlane.f32.xlu0 %v45
    %v49 = vpop.xlane.xlu0 %48
    %v50 = vmul.f32 %v44, %v44
    %v51 = vmul.f32 %v45, %v45
    %52 = vadd.xlane.f32.xlu0 %v50
    %v53 = vpop.xlane.xlu0 %52
    %54 = vadd.xlane.f32.xlu0 %v51
    %v55 = vpop.xlane.xlu0 %54
    %v56 = vmul.f32 %v47, 0.0078125
    %v57 = vmul.f32 %v49, 0.0078125
    %v58 = vmul.f32 %v53, 0.0078125
    %v59 = vmul.f32 %v55, 0.0078125
    %v60 = vmul.f32 %v56, %v56
    %v61 = vmul.f32 %v57, %v57
    %v62 = vsub.f32 %v58, %v60
    %v63 = vsub.f32 %v59, %v61
    %v64 = vmax.f32 %v62, 0.0
    %v65 = vmax.f32 %v63, 0.0
    %v66 = vsub.f32 %v44, %v56
    %v67 = vsub.f32 %v45, %v57
    %v68 = vadd.f32 %v64, 1e-05
    %v69 = vadd.f32 %v65, 1e-05
    %v70 = vrsqrt.pop %v68
    %v71 = vrsqrt.pop %v69
    %v72 = vmul.f32 %v66, %v70
    %v73 = vmul.f32 %v67, %v71
    %v74 = vpack.c.bf16 %v73, %v72
    %v75 = vld [vmem:[#allocation5] sm:$0xff]
    %v76 = vld [vmem:[#allocation5 + $0x8] sm:$0xff]
    %v77 = vld [vmem:[#allocation5 + $0x10] sm:$0xff]
    %v78 = vld [vmem:[#allocation5 + $0x18] sm:$0xff]
    %v79 = vld [vmem:[#allocation5 + $0x20] sm:$0xff]
    %v80 = vld [vmem:[#allocation5 + $0x28] sm:$0xff]
    %v81 = vld [vmem:[#allocation5 + $0x30] sm:$0xff]
    %v82 = vld [vmem:[#allocation5 + $0x38] sm:$0xff]
    %v83 = vld [vmem:[#allocation5 + $0x40] sm:$0xff]
    %v84 = vld [vmem:[#allocation5 + $0x48] sm:$0xff]
    %v85 = vld [vmem:[#allocation5 + $0x50] sm:$0xff]
    %v86 = vld [vmem:[#allocation5 + $0x58] sm:$0xff]
    %v87 = vld [vmem:[#allocation5 + $0x60] sm:$0xff]
    %v88 = vld [vmem:[#allocation5 + $0x68] sm:$0xff]
    %v89 = vld [vmem:[#allocation5 + $0x70] sm:$0xff]
    %v90 = vld [vmem:[#allocation5 + $0x78] sm:$0xff]
    %v91 = vld [vmem:[%s2] sm:$0x3]
    %v93 = vlaneseq
    %v94 = vshrl.u32 %v93, 7
    %v95 = vsub.s32 0, %v94
    %v96 = vrot.slane %v91, %v95
    %v97 = vlaneseq
    %v98 = vshrl.u32 %v97, 7
    %v99 = vsub.s32 1, %v98
    %v100 = vrot.slane %v91, %v99
    %v119 = vunpack.c.l.b16 %v75
    %v120 = vunpack.c.h.b16 %v75
    %v121 = vunpack.c.l.b16 %v76
    %v122 = vunpack.c.h.b16 %v76
    %v123 = vunpack.c.l.b16 %v77
    %v124 = vunpack.c.h.b16 %v77
    %v125 = vunpack.c.l.b16 %v78
    %v126 = vunpack.c.h.b16 %v78
    %v127 = vunpack.c.l.b16 %v79
    %v128 = vunpack.c.h.b16 %v79
    %v129 = vunpack.c.l.b16 %v80
    %v130 = vunpack.c.h.b16 %v80
    %v131 = vunpack.c.l.b16 %v81
    %v132 = vunpack.c.h.b16 %v81
    %v133 = vunpack.c.l.b16 %v82
    %v134 = vunpack.c.h.b16 %v82
    %v135 = vunpack.c.l.b16 %v83
    %v136 = vunpack.c.h.b16 %v83
    %v137 = vunpack.c.l.b16 %v84
    %v138 = vunpack.c.h.b16 %v84
    %v139 = vunpack.c.l.b16 %v85
    %v140 = vunpack.c.h.b16 %v85
    %v141 = vunpack.c.l.b16 %v86
    %v142 = vunpack.c.h.b16 %v86
    %v143 = vunpack.c.l.b16 %v87
    %v144 = vunpack.c.h.b16 %v87
    %v145 = vunpack.c.l.b16 %v88
    %v146 = vunpack.c.h.b16 %v88
    %v147 = vunpack.c.l.b16 %v89
    %v148 = vunpack.c.h.b16 %v89
    %v149 = vunpack.c.l.b16 %v90
    %v150 = vunpack.c.h.b16 %v90
    %v151 = vpack.c.b16 %v121, %v119
    %v152 = vpack.c.b16 %v122, %v120
    %v153 = vpack.c.b16 %v125, %v123
    %v154 = vpack.c.b16 %v126, %v124
    %v155 = vpack.c.b16 %v129, %v127
    %v156 = vpack.c.b16 %v130, %v128
    %v157 = vpack.c.b16 %v133, %v131
    %v158 = vpack.c.b16 %v134, %v132
    %v159 = vpack.c.b16 %v137, %v135
    %v160 = vpack.c.b16 %v138, %v136
    %v161 = vpack.c.b16 %v141, %v139
    %v162 = vpack.c.b16 %v142, %v140
    %v163 = vpack.c.b16 %v145, %v143
    %v164 = vpack.c.b16 %v146, %v144
    %v165 = vpack.c.b16 %v149, %v147
    %v166 = vpack.c.b16 %v150, %v148
    %183 = vmatprep.subr.bf16.mxu0 %v152
    %184 = vmatpush1.bf16.msra.mxu0 %v151
    %185 = vmatprep.subr.bf16.mxu0 %v154
    %186 = vmatpush1.bf16.msra.mxu0 %v153
    %187 = vmatprep.subr.bf16.mxu0 %v156
    %188 = vmatpush1.bf16.msra.mxu0 %v155
    %189 = vmatprep.subr.bf16.mxu0 %v158
    %190 = vmatpush1.bf16.msra.mxu0 %v157
    %191 = vmatprep.subr.bf16.mxu0 %v160
    %192 = vmatpush1.bf16.msra.mxu0 %v159
    %193 = vmatprep.subr.bf16.mxu0 %v162
    %194 = vmatpush1.bf16.msra.mxu0 %v161
    %195 = vmatprep.subr.bf16.mxu0 %v164
    %196 = vmatpush1.bf16.msra.mxu0 %v163
    %197 = vmatprep.subr.bf16.mxu0 %v166
    %198 = vmatpush1.bf16.msra.mxu0 %v165
    %199 = vmatprep.subr.bf16.mxu0 0
    %200 = vmatpush1.bf16.msra.mxu0 0
    %201 = vmatprep.subr.bf16.mxu0 0
    %202 = vmatpush1.bf16.msra.mxu0 0
    %203 = vmatprep.subr.bf16.mxu0 0
    %204 = vmatpush1.bf16.msra.mxu0 0
    %205 = vmatprep.subr.bf16.mxu0 0
    %206 = vmatpush1.bf16.msra.mxu0 0
    %207 = vmatprep.subr.bf16.mxu0 0
    %208 = vmatpush1.bf16.msra.mxu0 0
    %209 = vmatprep.subr.bf16.mxu0 0
    %210 = vmatpush1.bf16.msra.mxu0 0
    %211 = vmatprep.subr.bf16.mxu0 0
    %212 = vmatpush1.bf16.msra.mxu0 0
    %213 = vmatprep.subr.bf16.mxu0 0
    %214 = vmatpush1.bf16.msra.mxu0 0
    %215 = vmatprep.mubr.bf16.mxu0 0
    %216 = vmatmul.mubr.bf16.gmra.mrb[0].mxu0 %v74
    %v217 = vpop.f32.mrb[0].mxu0
    %v218 = vadd.f32 %v96, %v217
    %v219 = vpop.f32.mrb[0].mxu0
    %v220 = vadd.f32 %v100, %v219
    %v221 = vpop.f32.mrb[0].mxu0
    %v222 = vadd.f32 %v96, %v221
    %v223 = vpop.f32.mrb[0].mxu0
    %v224 = vadd.f32 %v100, %v223
    %225 = vdwg.mxu0
    %226 = vst [vmem:[#allocation7] sm:$0xff] %v218
    %227 = vst [vmem:[#allocation7 + $0x8] sm:$0xff] %v220
    %228 = vst [vmem:[#allocation7 + $0x10] sm:$0xff] %v222
    %229 = vst [vmem:[#allocation7 + $0x18] sm:$0xff] %v224
    // Predicated region
    $region22: #{tpu_custom_call.1} parent=1 // pred_check
      _
    $region23: #{tpu_custom_call.1} parent=1 // pred_check_branch
      %231 = sbr.rel (0) target = $region25
    $region24: #{tpu_custom_call.1} parent=1 // pred_region
      %s233 = ssub.s32 512, 512
      %234 = vsyncadd [#allocation4], %s233
      %s235 = sshll.u32 [#allocation7], 4
      %s236 = int_to_ptr.vmem [resolvable:$true] %s235
      %241 = dma.vmem_to_hbm [thread:$0]  %s236, 512, %s3, [#allocation4], 256, 256, 16
    $region25: #{tpu_custom_call.1} parent=1 // pred_fallthru
      _
    // Predicated region
    $region26: #{tpu_custom_call.1} parent=1 // pred_check
      _
    $region27: #{tpu_custom_call.1} parent=1 // pred_check_branch
      %243 = sbr.rel (0) target = $region29
    $region28: #{tpu_custom_call.1} parent=1 // pred_region
      %244 = dma.done [#allocation4], 512
    $region29: #{tpu_custom_call.1} parent=1 // pred_fallthru
      _
    %245 = vsyncpa [#allocation3], 1
    %246 = vsyncpa [#allocation6], 1
    %247 = vsyncpa [#allocation4], 1

</llo_original>
